<compile_context>
chip_gen: v7x
topology: tpu7x:2x2x1
jax: 0.10.0
libtpu: 0.0.40
codegen_flags: <defaults>
</compile_context>

<pallas_src>
import jax
import jax.numpy as jnp
from jax.experimental import pallas as pl
from jax.experimental.pallas import tpu as pltpu


# ---------------------------------------------------------------------------
# Tile / budget helpers.
# ---------------------------------------------------------------------------
def _vmem_limit_bytes():
    """Generation-aware scoped-VMEM budget (3/4 of physical, 32..96 MiB)."""
    try:
        phys = int(pltpu.get_tpu_info().vmem_capacity_bytes)
    except Exception:
        phys = 64 * 1024 * 1024  # conservative (v7x-sized) fallback
    return min(max((phys * 3) // 4, 32 * 1024 * 1024), 96 * 1024 * 1024)


def _pick_row_tile(rows, max_rows=512):
    """Row tile: full extent if small, else largest multiple-of-8 divisor."""
    if rows <= max_rows:
        return rows
    best = 0
    t = 8
    while t <= max_rows:
        if rows % t == 0:
            best = t
        t += 8
    return best if best else rows


def _pick_hw_tile(hw, row_tile, elem_bytes, target_bytes):
    """Largest multiple-of-128 divisor of hw keeping the block under target_bytes."""
    if row_tile * hw * elem_bytes <= target_bytes:
        return hw
    max_elems = max(target_bytes // max(row_tile * elem_bytes, 1), 128)
    best = 0
    t = 128
    limit = min(hw, max_elems)
    while t <= limit:
        if hw % t == 0:
            best = t
        t += 128
    if best:
        return best
    # TODO(synk): HW with no multiple-of-128 divisor falls back to the full
    # extent (lane-sparse edge stores / possibly oversized single block).
    return hw


# ---------------------------------------------------------------------------
# Tiled pass 1: per-row sum / sum-of-squares (reduction over HW only; the
# row axis stays "parallel" so v7x can shard it across both TensorCores).
# ---------------------------------------------------------------------------
def _stats_kernel(x_ref, sum_ref, sq_ref):
    # x_ref: (r_t, hw_t); sum_ref/sq_ref: (r_t, 1) f32, resident across the
    # inner ("arbitrary") HW grid axis -> P3 accumulator pattern.
    @pl.when(pl.program_id(1) == 0)
    def _():
        sum_ref[...] = jnp.zeros_like(sum_ref)
        sq_ref[...] = jnp.zeros_like(sq_ref)

    xf = x_ref[...].astype(jnp.float32)
    sum_ref[...] += jnp.sum(xf, axis=1, keepdims=True)
    sq_ref[...] += jnp.sum(xf * xf, axis=1, keepdims=True)


# ---------------------------------------------------------------------------
# Tiled pass 2: streaming FMA  out = x * a + b  (a, b are per-row).
# ---------------------------------------------------------------------------
def _apply_kernel(a_ref, b_ref, x_ref, o_ref):
    o_ref[...] = (x_ref[...].astype(jnp.float32) * a_ref[...]
                  + b_ref[...]).astype(o_ref.dtype)


def cond_batch_norm(x_nchw, noise, w_shift, b_shift, w_scale, b_scale,
                    eps=1e-5, force_two_pass=False):
    """x_nchw: (N,C,H,W); noise: (N,Z,1,1); conv weights: (C,Z,1,1); biases: (C,)."""
    N, C, H, W = x_nchw.shape
    Nz, Z, Hn, Wn = noise.shape
    assert Nz == N and (Hn, Wn) == (1, 1)

    HW = H * W
    R = N * C
    elem = jnp.dtype(x_nchw.dtype).itemsize
    x_bytes = R * HW * elem

    vmem_limit = _vmem_limit_bytes()

    # Tiny per-(N,C) prep in plain JAX (hoisted off the streaming path):
    # 1x1-conv == (N,Z) @ (Z,C) matmul + bias.  Independent of batch stats.
    z = noise.reshape(N, Z).astype(jnp.float32)
    scale = jnp.dot(z, w_scale[:, :, 0, 0].T) + b_scale      # (N, C)
    shift = jnp.dot(z, w_shift[:, :, 0, 0].T) + b_shift      # (N, C)

    # ------------------------------------------------------------------
    # Fused fast path: whole x resident in VMEM -> single HBM read + write.
    # Budget uses f32/padded sizes (C padded to 8 sublanes, HW to 128 lanes)
    # and a 6x factor for in/out buffers + in-kernel f32 temporaries.
    # ------------------------------------------------------------------
    c_pad = -(-C // 8) * 8
    hw_pad = -(-HW // 128) * 128
    x_vmem_est = N * c_pad * hw_pad * 4
    fused_ok = (6 * x_vmem_est + (1 << 20)) <= vmem_limit

    if fused_ok and not force_two_pass:
        cnt = float(N * HW)
        eps_f = float(eps)

        def _fused_kernel(scale_ref, shift_ref, x_ref, o_ref):
            # x_ref: (N, C, HW) full block; scale/shift: (N, C, 1) f32.
            xf = x_ref[...].astype(jnp.float32)
            s = jnp.sum(jnp.sum(xf, axis=2, keepdims=True),
                        axis=0, keepdims=True) / cnt                  # (1,C,1)
            sq = jnp.sum(jnp.sum(xf * xf, axis=2, keepdims=True),
                         axis=0, keepdims=True) / cnt                 # (1,C,1)
            inv_std = jax.lax.rsqrt(sq - s * s + jnp.float32(eps_f))  # (1,C,1)
            a = scale_ref[...] * inv_std                               # (N,C,1)
            b = shift_ref[...] - a * s                                 # (N,C,1)
            o_ref[...] = (xf * a + b).astype(o_ref.dtype)

        out = pl.pallas_call(
            _fused_kernel,
            out_shape=jax.ShapeDtypeStruct((N, C, HW), x_nchw.dtype),
            compiler_params=pltpu.CompilerParams(vmem_limit_bytes=vmem_limit),
            cost_estimate=pl.CostEstimate(
                flops=int(5 * R * HW),
                transcendentals=int(C),
                bytes_accessed=int(2 * x_bytes + 2 * R * 4)),
        )(scale.reshape(N, C, 1).astype(jnp.float32),
          shift.reshape(N, C, 1).astype(jnp.float32),
          x_nchw.reshape(N, C, HW))
        return out.reshape(N, C, H, W)

    # ------------------------------------------------------------------
    # Tiled two-pass path.  x viewed as (N*C, HW): metadata-only reshape,
    # sublane-dense rows even for small C, lane-dense HW tiles.
    # ------------------------------------------------------------------
    x = x_nchw.reshape(R, HW)
    r_t = _pick_row_tile(R)
    target_block_bytes = max(min(4 << 20, vmem_limit // 8), 1 << 19)
    hw_t = _pick_hw_tile(HW, r_t, elem, target_block_bytes)
    n_r = R // r_t
    n_hw = HW // hw_t

    # ---- Pass 1: per-row partial stats (megacore-shardable row axis). ----
    sums, sqs = pl.pallas_call(
        _stats_kernel,
        grid=(n_r, n_hw),
        in_specs=[pl.BlockSpec((r_t, hw_t), lambda i, j: (i, j))],
        out_specs=[pl.BlockSpec((r_t, 1), lambda i, j: (i, 0)),
                   pl.BlockSpec((r_t, 1), lambda i, j: (i, 0))],
        out_shape=[jax.ShapeDtypeStruct((R, 1), jnp.float32),
                   jax.ShapeDtypeStruct((R, 1), jnp.float32)],
        compiler_params=pltpu.CompilerParams(
            dimension_semantics=("parallel", "arbitrary"),
            vmem_limit_bytes=vmem_limit),
        cost_estimate=pl.CostEstimate(
            flops=int(3 * R * HW), transcendentals=0,
            bytes_accessed=int(x_bytes + 2 * R * 4)),
    )(x)

    # Cross-N combine + mean/var/inv_std fold in JAX (negligible work).
    cnt = jnp.float32(N * HW)
    mean = jnp.sum(sums.reshape(N, C), axis=0) / cnt          # (C,)
    var = jnp.sum(sqs.reshape(N, C), axis=0) / cnt - mean * mean
    inv_std = jax.lax.rsqrt(var + jnp.float32(eps))           # (C,)

    a = (scale * inv_std[None, :]).reshape(R, 1)                          # per-row
    b = (shift - scale * inv_std[None, :] * mean[None, :]).reshape(R, 1)  # per-row

    # ---- Pass 2: streaming FMA, fully parallel grid. ----
    out = pl.pallas_call(
        _apply_kernel,
        grid=(n_r, n_hw),
        in_specs=[pl.BlockSpec((r_t, 1), lambda i, j: (i, 0)),
                  pl.BlockSpec((r_t, 1), lambda i, j: (i, 0)),
                  pl.BlockSpec((r_t, hw_t), lambda i, j: (i, j))],
        out_specs=pl.BlockSpec((r_t, hw_t), lambda i, j: (i, j)),
        out_shape=jax.ShapeDtypeStruct((R, HW), x_nchw.dtype),
        compiler_params=pltpu.CompilerParams(
            dimension_semantics=("parallel", "parallel"),
            vmem_limit_bytes=vmem_limit),
        cost_estimate=pl.CostEstimate(
            flops=int(2 * R * HW), transcendentals=0,
            bytes_accessed=int(2 * x_bytes + 2 * R * 4)),
    )(a, b, x)

    return out.reshape(N, C, H, W)  # metadata-only reshape back to NCHW


def _reference(x, noise, w_shift, b_shift, w_scale, b_scale, eps=1e-5):
    """Pure-JAX reference matching the PyTorch forward."""
    mean = jnp.mean(x, axis=(0, 2, 3), keepdims=True)
    var = jnp.mean((x - mean) ** 2, axis=(0, 2, 3), keepdims=True)
    norm = (x - mean) / jnp.sqrt(var + eps)
    scale = jnp.einsum("nzhw,cz->nchw", noise, w_scale[:, :, 0, 0]) \
        + b_scale[None, :, None, None]
    shift = jnp.einsum("nzhw,cz->nchw", noise, w_shift[:, :, 0, 0]) \
        + b_shift[None, :, None, None]
    return norm * scale + shift


if __name__ == "__main__":
    N, C, H, W = 2, 4, 16, 16     # x_dim = 4
    Z = 8                         # z_dim = 8

    key = jax.random.PRNGKey(0)
    kx, kn, k1, k2, k3, k4 = jax.random.split(key, 6)

    x = jax.random.normal(kx, (N, C, H, W), dtype=jnp.float32)
    noise = jax.random.normal(kn, (N, Z, 1, 1), dtype=jnp.float32)

    # Conv2d(z_dim, x_dim, 1x1) parameter init (uniform, deterministic).
    bound = 1.0 / (Z ** 0.5)
    w_shift = jax.random.uniform(k1, (C, Z, 1, 1), jnp.float32, -bound, bound)
    b_shift = jax.random.uniform(k2, (C,), jnp.float32, -bound, bound)
    w_scale = jax.random.uniform(k3, (C, Z, 1, 1), jnp.float32, -bound, bound)
    b_scale = jax.random.uniform(k4, (C,), jnp.float32, -bound, bound)

    ref = _reference(x, noise, w_shift, b_shift, w_scale, b_scale)

    # Default path (fused single-pass at these small shapes).
    out_fused = cond_batch_norm(x, noise, w_shift, b_shift, w_scale, b_scale)
    out_fused = jax.block_until_ready(out_fused)
    assert out_fused.shape == (N, C, H, W)
    assert jnp.allclose(out_fused, ref, atol=1e-4, rtol=1e-4), "fused path mismatch"

    # Tiled two-pass path (exercised explicitly so both paths stay validated).
    out_tiled = cond_batch_norm(x, noise, w_shift, b_shift, w_scale, b_scale,
                                force_two_pass=True)
    out_tiled = jax.block_until_ready(out_tiled)
    assert out_tiled.shape == (N, C, H, W)
    assert jnp.allclose(out_tiled, ref, atol=1e-4, rtol=1e-4), "tiled path mismatch"

    print("KERNEL_OK")
</pallas_src>

<mosaic_0001>
module attributes {stable_mosaic.version = 11 : i64} {
  func.func @_fused_kernel(%arg0: memref<2x4x1xf32, #tpu.memory_space<vmem>>, %arg1: memref<2x4x1xf32, #tpu.memory_space<vmem>>, %arg2: memref<2x4x256xf32, #tpu.memory_space<vmem>>, %arg3: memref<2x4x256xf32, #tpu.memory_space<vmem>>) attributes {dimension_semantics = [], scalar_prefetch = 0 : i64, scratch_operands = 0 : i64, tpu.core_type = #tpu.core_type<tc>} {
    %c0 = arith.constant 0 : index
    %c0_0 = arith.constant 0 : index
    %c0_1 = arith.constant 0 : index
    %0 = vector.load %arg2[%c0, %c0_0, %c0_1] : memref<2x4x256xf32, #tpu.memory_space<vmem>>, vector<2x4x256xf32>
    %cst = arith.constant dense<0.000000e+00> : vector<2x4xf32>
    %1 = vector.multi_reduction <add>, %0, %cst [2] : vector<2x4x256xf32> to vector<2x4xf32>
    %2 = vector.shape_cast %1 : vector<2x4xf32> to vector<2x4x1xf32>
    %cst_2 = arith.constant dense<0.000000e+00> : vector<4x1xf32>
    %3 = vector.multi_reduction <add>, %2, %cst_2 [0] : vector<2x4x1xf32> to vector<4x1xf32>
    %4 = vector.shape_cast %3 : vector<4x1xf32> to vector<1x4x1xf32>
    %cst_3 = arith.constant 5.120000e+02 : f32
    %5 = vector.broadcast %cst_3 : f32 to vector<1x4x1xf32>
    %6 = arith.divf %4, %5 : vector<1x4x1xf32>
    %7 = arith.mulf %0, %0 : vector<2x4x256xf32>
    %cst_4 = arith.constant dense<0.000000e+00> : vector<2x4xf32>
    %8 = vector.multi_reduction <add>, %7, %cst_4 [2] : vector<2x4x256xf32> to vector<2x4xf32>
    %9 = vector.shape_cast %8 : vector<2x4xf32> to vector<2x4x1xf32>
    %cst_5 = arith.constant dense<0.000000e+00> : vector<4x1xf32>
    %10 = vector.multi_reduction <add>, %9, %cst_5 [0] : vector<2x4x1xf32> to vector<4x1xf32>
    %11 = vector.shape_cast %10 : vector<4x1xf32> to vector<1x4x1xf32>
    %cst_6 = arith.constant 5.120000e+02 : f32
    %12 = vector.broadcast %cst_6 : f32 to vector<1x4x1xf32>
    %13 = arith.divf %11, %12 : vector<1x4x1xf32>
    %14 = arith.mulf %6, %6 : vector<1x4x1xf32>
    %15 = arith.subf %13, %14 : vector<1x4x1xf32>
    %cst_7 = arith.constant 9.99999974E-6 : f32
    %16 = vector.broadcast %cst_7 : f32 to vector<1x4x1xf32>
    %17 = arith.addf %15, %16 : vector<1x4x1xf32>
    %18 = math.rsqrt %17 : vector<1x4x1xf32>
    %c0_8 = arith.constant 0 : index
    %c0_9 = arith.constant 0 : index
    %c0_10 = arith.constant 0 : index
    %19 = vector.load %arg0[%c0_8, %c0_9, %c0_10] : memref<2x4x1xf32, #tpu.memory_space<vmem>>, vector<2x4x1xf32>
    %20 = vector.broadcast %18 : vector<1x4x1xf32> to vector<2x4x1xf32>
    %21 = arith.mulf %19, %20 : vector<2x4x1xf32>
    %c0_11 = arith.constant 0 : index
    %c0_12 = arith.constant 0 : index
    %c0_13 = arith.constant 0 : index
    %22 = vector.load %arg1[%c0_11, %c0_12, %c0_13] : memref<2x4x1xf32, #tpu.memory_space<vmem>>, vector<2x4x1xf32>
    %23 = vector.broadcast %6 : vector<1x4x1xf32> to vector<2x4x1xf32>
    %24 = arith.mulf %21, %23 : vector<2x4x1xf32>
    %25 = arith.subf %22, %24 : vector<2x4x1xf32>
    %26 = vector.broadcast %21 : vector<2x4x1xf32> to vector<2x4x256xf32>
    %27 = arith.mulf %0, %26 : vector<2x4x256xf32>
    %28 = vector.broadcast %25 : vector<2x4x1xf32> to vector<2x4x256xf32>
    %29 = arith.addf %27, %28 : vector<2x4x256xf32>
    %c0_14 = arith.constant 0 : index
    %c0_15 = arith.constant 0 : index
    %c0_16 = arith.constant 0 : index
    %30 = vector.load %arg3[%c0_14, %c0_15, %c0_16] : memref<2x4x256xf32, #tpu.memory_space<vmem>>, vector<2x4x256xf32>
    tpu.vector_store %arg3[%c0_14, %c0_15, %c0_16], %29 {strides = array<i32>} : memref<2x4x256xf32, #tpu.memory_space<vmem>>, vector<2x4x256xf32>,
    return
  }
}

</mosaic_0001>

<llo_original>
// kernel: tpu_custom_call.1
$region0: #{tpu_custom_call.1}
  #allocation0 [shape = 'u32[]', space=smem, size = 0x4, offset = 0x4, fixed_abs, tag = 'smem constant byte address 0x4 - core index']
  #allocation1 [shape = 'u32[144,128]{1,0:T(1,128)}', space=vmem, size = 0x12000, scoped, tag = 'internal scratch']
  %s0 = inlined_call_operand.vmem [shape: f32[2,4,1], index: 0, kind: input, shape index: {}]
  %s1 = inlined_call_operand.vmem [shape: f32[2,4,1], index: 1, kind: input, shape index: {}]
  %s2 = inlined_call_operand.vmem [shape: f32[2,4,256], index: 2, kind: input, shape index: {}]
  %s3 = inlined_call_operand.hbm [shape: f32[2,4,256], index: 3, kind: output, shape index: {}]
  %s4 = sld [smem:[#allocation0]]
  $region22: #{tpu_custom_call.1} parent=0
    _
  %s6 = ssub.s32 1, %s4
  %s7 = scalar_select 0, %s6, %s4
  $region1: #{tpu_custom_call.1} parent=0
    #allocation2 [shape = 'u8[8192]{0}', space=vmem, size = 0x2000, scoped, tag = 'output window, operand 0, single buffered']
    #allocation3 [shape = 's32[1]{0}', space=sflag, size = 0x4, scoped, tag = 'scoped memory for tpu_custom_call.1']
    %8 = vsyncpa [#allocation3], 0
    // Predicated region
    $region2: #{tpu_custom_call.1} parent=1 // pred_check
      _
    $region3: #{tpu_custom_call.1} parent=1 // pred_check_branch
      %10 = sbr.rel (0) target = $region5
    $region4: #{tpu_custom_call.1} parent=1 // pred_region
      _
    $region5: #{tpu_custom_call.1} parent=1 // pred_fallthru
      _
    // Predicated region
    $region6: #{tpu_custom_call.1} parent=1 // pred_check
      _
    $region7: #{tpu_custom_call.1} parent=1 // pred_check_branch
      %12 = sbr.rel (0) target = $region9
    $region8: #{tpu_custom_call.1} parent=1 // pred_region
      _
    $region9: #{tpu_custom_call.1} parent=1 // pred_fallthru
      _
    // Predicated region
    $region10: #{tpu_custom_call.1} parent=1 // pred_check
      _
    $region11: #{tpu_custom_call.1} parent=1 // pred_check_branch
      %14 = sbr.rel (0) target = $region13
    $region12: #{tpu_custom_call.1} parent=1 // pred_region
      _
    $region13: #{tpu_custom_call.1} parent=1 // pred_fallthru
      _
    %v15 = vld [vmem:[%s2] sm:$0xff]
    %v16 = vld [vmem:[%s2 + $0x8] sm:$0xff]
    %v19 = vcombine.high %v15, %v15
    %v20 = vcombine.high %v16, %v16
    %vm23 = vcmask 1043456
    %v24 = vsel %vm23, %v15, 0.0
    %v25 = vsel %vm23, %v19, 0.0
    %v26 = vadd.f32 %v24, %v25
    %27 = vadd.xlane.f32.xlu0 %v26
    %v28 = vpop.xlane.xlu0 %27
    %v29 = vsel %vm23, %v16, 0.0
    %v30 = vsel %vm23, %v20, 0.0
    %v31 = vadd.f32 %v29, %v30
    %32 = vadd.xlane.f32.xlu0 %v31
    %v33 = vpop.xlane.xlu0 %32
    %v34 = vsel %vm23, %v28, 0.0
    %v35 = vsel %vm23, %v33, 0.0
    %v36 = vadd.f32 %v34, %v35
    %v37 = vrcp.pop 512.0
    %v38 = vmul.f32 %v36, %v37
    %v39 = vmul.f32 %v15, %v15
    %v40 = vmul.f32 %v16, %v16
    %v43 = vcombine.high %v39, %v39
    %v44 = vcombine.high %v40, %v40
    %v47 = vsel %vm23, %v39, 0.0
    %v48 = vsel %vm23, %v43, 0.0
    %v49 = vadd.f32 %v47, %v48
    %50 = vadd.xlane.f32.xlu0 %v49
    %v51 = vpop.xlane.xlu0 %50
    %v52 = vsel %vm23, %v40, 0.0
    %v53 = vsel %vm23, %v44, 0.0
    %v54 = vadd.f32 %v52, %v53
    %55 = vadd.xlane.f32.xlu0 %v54
    %v56 = vpop.xlane.xlu0 %55
    %v57 = vsel %vm23, %v51, 0.0
    %v58 = vsel %vm23, %v56, 0.0
    %v59 = vadd.f32 %v57, %v58
    %v60 = vmul.f32 %v59, %v37
    %v61 = vmul.f32 %v38, %v38
    %v62 = vsub.f32 %v60, %v61
    %v63 = vadd.f32 %v62, 1e-05
    %v64 = vrsqrt.pop %v63
    %v65 = vld [vmem:[%s0] sm:$0xf]
    %v66 = vld [vmem:[%s0 + $0x4] sm:$0xf]
    %v67 = vmul.f32 %v65, %v64
    %v68 = vmul.f32 %v66, %v64
    %v69 = vld [vmem:[%s1] sm:$0xf]
    %v70 = vld [vmem:[%s1 + $0x4] sm:$0xf]
    %v71 = vmul.f32 %v67, %v38
    %v72 = vmul.f32 %v68, %v38
    %v73 = vsub.f32 %v69, %v71
    %v74 = vsub.f32 %v70, %v72
    %76 = vset.pattern.permute.xlu0 0
    %77 = vperm.xlu0 %76, %v67
    %v78 = vpop.permute.xlu0 %77
    %80 = vset.pattern.permute.xlu0 0
    %81 = vperm.xlu0 %80, %v68
    %v82 = vpop.permute.xlu0 %81
    %v84 = vunpack.c.l.s4 839922192
    %v85 = vunpack.c.0.s8 %v84
    %v86 = vlaneseq
    %v87 = vshrl.u32 %v86, 7
    %v88 = vsub.s32 %v85, %v87
    %v89 = vrot.slane %v78, %v88
    %v91 = vunpack.c.l.s4 839922192
    %v92 = vunpack.c.0.s8 %v91
    %v93 = vlaneseq
    %v94 = vshrl.u32 %v93, 7
    %v95 = vsub.s32 %v92, %v94
    %v96 = vrot.slane %v82, %v95
    %v99 = vmul.f32 %v15, %v89
    %v100 = vmul.f32 %v16, %v96
    %102 = vset.pattern.permute.xlu0 0
    %103 = vperm.xlu0 %102, %v73
    %v104 = vpop.permute.xlu0 %103
    %106 = vset.pattern.permute.xlu0 0
    %107 = vperm.xlu0 %106, %v74
    %v108 = vpop.permute.xlu0 %107
    %v110 = vunpack.c.l.s4 839922192
    %v111 = vunpack.c.0.s8 %v110
    %v112 = vlaneseq
    %v113 = vshrl.u32 %v112, 7
    %v114 = vsub.s32 %v111, %v113
    %v115 = vrot.slane %v104, %v114
    %v117 = vunpack.c.l.s4 839922192
    %v118 = vunpack.c.0.s8 %v117
    %v119 = vlaneseq
    %v120 = vshrl.u32 %v119, 7
    %v121 = vsub.s32 %v118, %v120
    %v122 = vrot.slane %v108, %v121
    %v125 = vadd.f32 %v99, %v115
    %v126 = vadd.f32 %v100, %v122
    %127 = vst [vmem:[#allocation2] sm:$0xff] %v125
    %128 = vst [vmem:[#allocation2 + $0x8] sm:$0xff] %v126
    // Predicated region
    $region14: #{tpu_custom_call.1} parent=1 // pred_check
      _
    $region15: #{tpu_custom_call.1} parent=1 // pred_check_branch
      %130 = sbr.rel (0) target = $region17
    $region16: #{tpu_custom_call.1} parent=1 // pred_region
      %s132 = ssub.s32 256, 256
      %133 = vsyncadd [#allocation3], %s132
      %s134 = sshll.u32 [#allocation2], 4
      %s135 = int_to_ptr.vmem [resolvable:$true] %s134
      %140 = dma.vmem_to_hbm [thread:$0]  %s135, 256, %s3, [#allocation3], 128, 128, 8
    $region17: #{tpu_custom_call.1} parent=1 // pred_fallthru
      _
    // Predicated region
    $region18: #{tpu_custom_call.1} parent=1 // pred_check
      _
    $region19: #{tpu_custom_call.1} parent=1 // pred_check_branch
      %142 = sbr.rel (0) target = $region21
    $region20: #{tpu_custom_call.1} parent=1 // pred_region
      %143 = dma.done [#allocation3], 256
    $region21: #{tpu_custom_call.1} parent=1 // pred_fallthru
      _
    %144 = vsyncpa [#allocation3], 1

</llo_original>
